<compile_context>
chip_gen: v7x
topology: tpu7x:2x2x1
jax: 0.10.0
libtpu: 0.0.40
codegen_flags: <defaults>
</compile_context>

<pallas_src>
import numpy as np
import jax
import jax.numpy as jnp
from jax import lax
from jax.experimental import pallas as pl
from jax.experimental.pallas import tpu as pltpu

C1, C2 = 2, 2          # layer1 / layer2 output channels (BasicUnit_1_2_2)
LANES = 128            # TPU vreg lane width


def make_basic_unit(w1, w2, g1, b1, g2, b2, eps, N, H, W):
    """Build a callable (stacked input -> (S,128) output) for fixed params/shapes."""
    w1 = np.asarray(w1, np.float32)          # (2, 1, 3, 3)
    w2 = np.asarray(w2, np.float32)          # (2, 2, 3, 3)
    g1 = np.asarray(g1, np.float32); b1 = np.asarray(b1, np.float32)
    g2 = np.asarray(g2, np.float32); b2 = np.asarray(b2, np.float32)
    eps = float(eps)

    P = N * H * W                            # elements per channel plane
    assert P % LANES == 0 and (H * W) % LANES == 0, \
        "toy kernel assumes N*H*W and H*W are multiples of 128"
    S = (C2 * P) // LANES                    # sublane rows of the stacked slab (8 here)
    SH = S // 2                              # rows per channel half
    SI = (H * W) // LANES                    # rows per single image
    inv_p = 1.0 / float(P)

    # Host-precomputed row/col planes: no vector div/mod on the VPU, and the
    # same code path works for non-power-of-two H/W.
    g = np.arange(S * LANES, dtype=np.int64).reshape(S, LANES)
    p_img = g % (H * W)
    row_np = (p_img // W).astype(np.int32)
    col_np = (p_img % W).astype(np.int32)

    taps = [(di - 1, dj - 1) for di in range(3) for dj in range(3)]

    def kernel(x_ref, row_ref, col_ref, o_ref):
        # Everything works on (S, 128) f32 slabs (one full vreg at S=8),
        # flat order (channel, n, h, w).
        lane = lax.broadcasted_iota(jnp.int32, (S, LANES), 1)
        sub = lax.broadcasted_iota(jnp.int32, (S, LANES), 0)
        top = sub < SH                                     # channel-0 half

        row = row_ref[...]
        col = col_ref[...]
        # The 4 primitive edge compares (shared by every tap of both layers).
        row_lo = row >= 1            # needed when oi == -1
        row_hi = row <= H - 2        # needed when oi == +1
        col_lo = col >= 1            # needed when oj == -1
        col_hi = col <= W - 2        # needed when oj == +1

        def tap_mask(oi, oj):
            m = None
            if oi > 0:
                m = row_hi
            elif oi < 0:
                m = row_lo
            if oj > 0:
                m = col_hi if m is None else (m & col_hi)
            elif oj < 0:
                m = col_lo if m is None else (m & col_lo)
            return m

        def sub_roll(v, q):
            """out[sl] = v[(sl + q) % S]  (static sublane rotation, XLU)."""
            q = q % S
            if q == 0:
                return v
            return pltpu.roll(v, (S - q) % S, axis=0)

        def shift(v, s):
            """Flat shift: out_flat[p] = v_flat[(p + s) % (S*128)].
            Decomposed as lane roll + sublane roll + one lane-boundary select.
            Every wrapped/cross-image position is boundary-masked by the caller,
            so the cyclic wrap is harmless."""
            if s == 0:
                return v
            r = s % LANES                    # Python mod -> r in [0, 128)
            q = (s - r) // LANES
            lr = pltpu.roll(v, (LANES - r) % LANES, axis=1) if r else v
            a = sub_roll(lr, q)              # lanes with l + r <  128
            if r == 0:
                return a
            b = sub_roll(lr, q + 1)          # lanes with l + r >= 128
            return jnp.where(lane < LANES - r, a, b)

        def splat_halves(va, vb):
            """(S,128) constant: top half = va, bottom half = vb."""
            return jnp.where(top, jnp.float32(va), jnp.float32(vb))

        def bn_relu(y, gamma, beta):
            """Per-half (= per-channel) batch-statistics BN (two-pass) + ReLU.
            One big lane reduction shared by both channels; tiny per-half
            sublane sums afterwards."""
            ls = jnp.sum(y, axis=1, keepdims=True)                    # (S, 1)
            m0 = jnp.sum(ls[0:SH, :], keepdims=True) * inv_p          # (1, 1)
            m1 = jnp.sum(ls[SH:S, :], keepdims=True) * inv_p
            cent = y - jnp.where(top, m0, m1)
            ss = jnp.sum(cent * cent, axis=1, keepdims=True)          # (S, 1)
            v0 = jnp.sum(ss[0:SH, :], keepdims=True) * inv_p
            v1 = jnp.sum(ss[SH:S, :], keepdims=True) * inv_p
            sc0 = lax.rsqrt(v0 + eps) * float(gamma[0])
            sc1 = lax.rsqrt(v1 + eps) * float(gamma[1])
            z = cent * jnp.where(top, sc0, sc1) + splat_halves(float(beta[0]),
                                                               float(beta[1]))
            return jnp.maximum(z, jnp.float32(0.0))

        # ---------------- layer 1: conv 1 -> 2 --------------------------------
        # x_ref already holds [x | x] (input plane duplicated across halves), so
        # ONE shift + ONE multiply-add per tap feeds BOTH output channels.
        x = x_ref[...]
        y1 = jnp.zeros((S, LANES), jnp.float32)
        for (oi, oj) in taps:
            s = oi * W + oj
            sh = shift(x, s)
            if s != 0:
                sh = jnp.where(tap_mask(oi, oj), sh, jnp.float32(0.0))
            # per-tap weight splat is built right where it is consumed
            # (each one is used exactly once -> no redundant broadcasts)
            y1 = y1 + splat_halves(w1[0, 0, oi + 1, oj + 1],
                                   w1[1, 0, oi + 1, oj + 1]) * sh
        a1 = bn_relu(y1, g1, b1)             # stacked [chan0 | chan1]

        # ---------------- layer 2: conv 2 -> 2 --------------------------------
        # One shift per tap, shared by BOTH input channels.  Same-channel and
        # cross-channel weight terms accumulate separately; the cross term's
        # halves are swapped ONCE at the end (a single sublane roll).
        acc_s = jnp.zeros((S, LANES), jnp.float32)
        acc_c = jnp.zeros((S, LANES), jnp.float32)
        for (oi, oj) in taps:
            s = oi * W + oj
            sh = shift(a1, s)
            if s != 0:
                sh = jnp.where(tap_mask(oi, oj), sh, jnp.float32(0.0))
            acc_s = acc_s + splat_halves(w2[0, 0, oi + 1, oj + 1],
                                         w2[1, 1, oi + 1, oj + 1]) * sh
            acc_c = acc_c + splat_halves(w2[1, 0, oi + 1, oj + 1],
                                         w2[0, 1, oi + 1, oj + 1]) * sh
        y2 = acc_s + sub_roll(acc_c, SH)     # swap halves of the cross term
        z = bn_relu(y2, g2, b2)

        # ---------------- store in (n, c2, h, w) flat order --------------------
        # Internal order is (c2, n, h, w); permuting whole-image sublane blocks
        # here leaves the wrapper with a free reshape (no XLA transpose).
        for n in range(N):
            for c in range(C2):
                src = c * (N * SI) + n * SI
                dst = n * (C2 * SI) + c * SI
                o_ref[dst:dst + SI, :] = z[src:src + SI, :]

    # TODO(synk): for non-toy N/H/W, grid over batch/H-stripes marked "parallel"
    # (uses both v7x TensorCores), size blocks per generation via
    # pltpu.get_tpu_info() (64 MiB VMEM on v7x, raise vmem_limit_bytes on
    # v5e/v6e), and accumulate the two-pass BN sums in scratch across steps;
    # at this toy size a single resident gridless block is right.
    call = pl.pallas_call(
        kernel,
        out_shape=jax.ShapeDtypeStruct((S, LANES), jnp.float32),
    )
    row_j = jnp.asarray(row_np)
    col_j = jnp.asarray(col_np)

    def run(x_stacked):
        return call(x_stacked, row_j, col_j)

    return run


def basic_unit_1_2_2(x_nchw, params):
    """x_nchw: (N, 1, H, W) float32 -> (N, 2, H, W) float32."""
    N, C, H, W = x_nchw.shape
    assert C == 1
    run = make_basic_unit(*params, N=N, H=H, W=W)
    x4 = x_nchw.astype(jnp.float32).reshape(N * H * W // LANES, LANES)
    # duplicate the single input plane across the two channel halves (tiny op,
    # fuses under jit); the kernel then shares every roll/mask across channels.
    x_stacked = jnp.concatenate([x4, x4], axis=0)        # (S, 128)
    out = run(x_stacked)                                 # (S, 128), (n,c2,h,w) order
    return out.reshape(N, C2, H, W)                      # free reshape, no transpose


# ----------------------------- pure-JAX reference -----------------------------
def reference(x, w1, w2, g1, b1, g2, b2, eps):
    def conv(x, w):
        return lax.conv_general_dilated(
            x, w, window_strides=(1, 1), padding="SAME",
            dimension_numbers=("NCHW", "OIHW", "NCHW"))

    def bn_relu(x, g, b):
        mean = jnp.mean(x, axis=(0, 2, 3), keepdims=True)
        var = jnp.mean((x - mean) ** 2, axis=(0, 2, 3), keepdims=True)
        y = (x - mean) * lax.rsqrt(var + eps)
        y = y * g.reshape(1, -1, 1, 1) + b.reshape(1, -1, 1, 1)
        return jnp.maximum(y, 0.0)

    y = bn_relu(conv(x, w1), g1, b1)
    return bn_relu(conv(y, w2), g2, b2)


if __name__ == "__main__":
    key = jax.random.PRNGKey(0)
    k_x, k_w1, k_w2 = jax.random.split(key, 3)

    N, H, W = 2, 16, 16
    x = jax.random.normal(k_x, (N, 1, H, W), dtype=jnp.float32)

    # deterministic synthetic parameters (shapes from module __init__)
    w1 = np.asarray(jax.random.normal(k_w1, (2, 1, 3, 3), dtype=jnp.float32)) * 0.3
    w2 = np.asarray(jax.random.normal(k_w2, (2, 2, 3, 3), dtype=jnp.float32)) * 0.3
    g1, b1 = np.ones((2,), np.float32), np.zeros((2,), np.float32)   # BN default init
    g2, b2 = np.ones((2,), np.float32), np.zeros((2,), np.float32)
    eps = 1e-5
    params = (w1, w2, g1, b1, g2, b2, eps)

    run = jax.jit(lambda xx: basic_unit_1_2_2(xx, params))
    out = jax.block_until_ready(run(x))

    ref = jax.block_until_ready(
        reference(x, jnp.asarray(w1), jnp.asarray(w2),
                  jnp.asarray(g1), jnp.asarray(b1),
                  jnp.asarray(g2), jnp.asarray(b2), eps))

    np.testing.assert_allclose(np.asarray(out), np.asarray(ref),
                               rtol=1e-4, atol=1e-4)
    print("KERNEL_OK")
</pallas_src>

<mosaic_0001>
module attributes {stable_mosaic.version = 11 : i64} {
  func.func @kernel(%arg0: memref<8x128xf32, #tpu.memory_space<vmem>>, %arg1: memref<8x128xi32, #tpu.memory_space<vmem>>, %arg2: memref<8x128xi32, #tpu.memory_space<vmem>>, %arg3: memref<8x128xf32, #tpu.memory_space<vmem>>) attributes {dimension_semantics = [], scalar_prefetch = 0 : i64, scratch_operands = 0 : i64, tpu.core_type = #tpu.core_type<tc>} {
    %0 = tpu.iota {dimensions = array<i32: 1>} : vector<8x128xi32>
    %1 = tpu.iota {dimensions = array<i32: 0>} : vector<8x128xi32>
    %c4_i32 = arith.constant 4 : i32
    %2 = vector.broadcast %c4_i32 : i32 to vector<8x128xi32>
    %3 = arith.cmpi slt, %1, %2 : vector<8x128xi32>
    %c0 = arith.constant 0 : index
    %c0_0 = arith.constant 0 : index
    %4 = vector.load %arg1[%c0, %c0_0] : memref<8x128xi32, #tpu.memory_space<vmem>>, vector<8x128xi32>
    %c0_1 = arith.constant 0 : index
    %c0_2 = arith.constant 0 : index
    %5 = vector.load %arg2[%c0_1, %c0_2] : memref<8x128xi32, #tpu.memory_space<vmem>>, vector<8x128xi32>
    %c1_i32 = arith.constant 1 : i32
    %6 = vector.broadcast %c1_i32 : i32 to vector<8x128xi32>
    %7 = arith.cmpi sge, %4, %6 : vector<8x128xi32>
    %c14_i32 = arith.constant 14 : i32
    %8 = vector.broadcast %c14_i32 : i32 to vector<8x128xi32>
    %9 = arith.cmpi sle, %4, %8 : vector<8x128xi32>
    %c1_i32_3 = arith.constant 1 : i32
    %10 = vector.broadcast %c1_i32_3 : i32 to vector<8x128xi32>
    %11 = arith.cmpi sge, %5, %10 : vector<8x128xi32>
    %c14_i32_4 = arith.constant 14 : i32
    %12 = vector.broadcast %c14_i32_4 : i32 to vector<8x128xi32>
    %13 = arith.cmpi sle, %5, %12 : vector<8x128xi32>
    %c0_5 = arith.constant 0 : index
    %c0_6 = arith.constant 0 : index
    %14 = vector.load %arg0[%c0_5, %c0_6] : memref<8x128xf32, #tpu.memory_space<vmem>>, vector<8x128xf32>
    %cst = arith.constant 0.000000e+00 : f32
    %15 = vector.broadcast %cst : f32 to vector<8x128xf32>
    %c17_i32 = arith.constant 17 : i32
    %16 = tpu.dynamic_rotate %14 by %c17_i32 dim 1 : vector<8x128xf32>, i32 -> vector<8x128xf32>
    %c1_i32_7 = arith.constant 1 : i32
    %17 = tpu.dynamic_rotate %16 by %c1_i32_7 dim 0 : vector<8x128xf32>, i32 -> vector<8x128xf32>
    %c17_i32_8 = arith.constant 17 : i32
    %18 = vector.broadcast %c17_i32_8 : i32 to vector<8x128xi32>
    %19 = arith.cmpi slt, %0, %18 : vector<8x128xi32>
    %20 = arith.select %19, %17, %16 : vector<8x128xi1>, vector<8x128xf32>
    %21 = arith.andi %7, %11 : vector<8x128xi1>
    %cst_9 = arith.constant 0.000000e+00 : f32
    %22 = vector.broadcast %cst_9 : f32 to vector<8x128xf32>
    %23 = arith.select %21, %20, %22 : vector<8x128xi1>, vector<8x128xf32>
    %cst_10 = arith.constant -0.732736766 : f32
    %cst_11 = arith.constant 0.639060795 : f32
    %24 = vector.broadcast %cst_10 : f32 to vector<8x128xf32>
    %25 = vector.broadcast %cst_11 : f32 to vector<8x128xf32>
    %26 = arith.select %3, %24, %25 : vector<8x128xi1>, vector<8x128xf32>
    %27 = arith.mulf %26, %23 : vector<8x128xf32>
    %28 = arith.addf %15, %27 : vector<8x128xf32>
    %c16_i32 = arith.constant 16 : i32
    %29 = tpu.dynamic_rotate %14 by %c16_i32 dim 1 : vector<8x128xf32>, i32 -> vector<8x128xf32>
    %c1_i32_12 = arith.constant 1 : i32
    %30 = tpu.dynamic_rotate %29 by %c1_i32_12 dim 0 : vector<8x128xf32>, i32 -> vector<8x128xf32>
    %c16_i32_13 = arith.constant 16 : i32
    %31 = vector.broadcast %c16_i32_13 : i32 to vector<8x128xi32>
    %32 = arith.cmpi slt, %0, %31 : vector<8x128xi32>
    %33 = arith.select %32, %30, %29 : vector<8x128xi1>, vector<8x128xf32>
    %cst_14 = arith.constant 0.000000e+00 : f32
    %34 = vector.broadcast %cst_14 : f32 to vector<8x128xf32>
    %35 = arith.select %7, %33, %34 : vector<8x128xi1>, vector<8x128xf32>
    %cst_15 = arith.constant -0.610704184 : f32
    %cst_16 = arith.constant -0.0568717085 : f32
    %36 = vector.broadcast %cst_15 : f32 to vector<8x128xf32>
    %37 = vector.broadcast %cst_16 : f32 to vector<8x128xf32>
    %38 = arith.select %3, %36, %37 : vector<8x128xi1>, vector<8x128xf32>
    %39 = arith.mulf %38, %35 : vector<8x128xf32>
    %40 = arith.addf %28, %39 : vector<8x128xf32>
    %c15_i32 = arith.constant 15 : i32
    %41 = tpu.dynamic_rotate %14 by %c15_i32 dim 1 : vector<8x128xf32>, i32 -> vector<8x128xf32>
    %c1_i32_17 = arith.constant 1 : i32
    %42 = tpu.dynamic_rotate %41 by %c1_i32_17 dim 0 : vector<8x128xf32>, i32 -> vector<8x128xf32>
    %c15_i32_18 = arith.constant 15 : i32
    %43 = vector.broadcast %c15_i32_18 : i32 to vector<8x128xi32>
    %44 = arith.cmpi slt, %0, %43 : vector<8x128xi32>
    %45 = arith.select %44, %42, %41 : vector<8x128xi1>, vector<8x128xf32>
    %46 = arith.andi %7, %13 : vector<8x128xi1>
    %cst_19 = arith.constant 0.000000e+00 : f32
    %47 = vector.broadcast %cst_19 : f32 to vector<8x128xf32>
    %48 = arith.select %46, %45, %47 : vector<8x128xi1>, vector<8x128xf32>
    %cst_20 = arith.constant 0.0616632737 : f32
    %cst_21 = arith.constant 0.289203644 : f32
    %49 = vector.broadcast %cst_20 : f32 to vector<8x128xf32>
    %50 = vector.broadcast %cst_21 : f32 to vector<8x128xf32>
    %51 = arith.select %3, %49, %50 : vector<8x128xi1>, vector<8x128xf32>
    %52 = arith.mulf %51, %48 : vector<8x128xf32>
    %53 = arith.addf %40, %52 : vector<8x128xf32>
    %c1_i32_22 = arith.constant 1 : i32
    %54 = tpu.dynamic_rotate %14 by %c1_i32_22 dim 1 : vector<8x128xf32>, i32 -> vector<8x128xf32>
    %c1_i32_23 = arith.constant 1 : i32
    %55 = tpu.dynamic_rotate %54 by %c1_i32_23 dim 0 : vector<8x128xf32>, i32 -> vector<8x128xf32>
    %c1_i32_24 = arith.constant 1 : i32
    %56 = vector.broadcast %c1_i32_24 : i32 to vector<8x128xi32>
    %57 = arith.cmpi slt, %0, %56 : vector<8x128xi32>
    %58 = arith.select %57, %55, %54 : vector<8x128xi1>, vector<8x128xf32>
    %cst_25 = arith.constant 0.000000e+00 : f32
    %59 = vector.broadcast %cst_25 : f32 to vector<8x128xf32>
    %60 = arith.select %11, %58, %59 : vector<8x128xi1>, vector<8x128xf32>
    %cst_26 = arith.constant -0.106065065 : f32
    %cst_27 = arith.constant -0.390330046 : f32
    %61 = vector.broadcast %cst_26 : f32 to vector<8x128xf32>
    %62 = vector.broadcast %cst_27 : f32 to vector<8x128xf32>
    %63 = arith.select %3, %61, %62 : vector<8x128xi1>, vector<8x128xf32>
    %64 = arith.mulf %63, %60 : vector<8x128xf32>
    %65 = arith.addf %53, %64 : vector<8x128xf32>
    %cst_28 = arith.constant -0.228592217 : f32
    %cst_29 = arith.constant -0.224608153 : f32
    %66 = vector.broadcast %cst_28 : f32 to vector<8x128xf32>
    %67 = vector.broadcast %cst_29 : f32 to vector<8x128xf32>
    %68 = arith.select %3, %66, %67 : vector<8x128xi1>, vector<8x128xf32>
    %69 = arith.mulf %68, %14 : vector<8x128xf32>
    %70 = arith.addf %65, %69 : vector<8x128xf32>
    %c127_i32 = arith.constant 127 : i32
    %71 = tpu.dynamic_rotate %14 by %c127_i32 dim 1 : vector<8x128xf32>, i32 -> vector<8x128xf32>
    %c7_i32 = arith.constant 7 : i32
    %72 = tpu.dynamic_rotate %71 by %c7_i32 dim 0 : vector<8x128xf32>, i32 -> vector<8x128xf32>
    %c127_i32_30 = arith.constant 127 : i32
    %73 = vector.broadcast %c127_i32_30 : i32 to vector<8x128xi32>
    %74 = arith.cmpi slt, %0, %73 : vector<8x128xi32>
    %75 = arith.select %74, %71, %72 : vector<8x128xi1>, vector<8x128xf32>
    %cst_31 = arith.constant 0.000000e+00 : f32
    %76 = vector.broadcast %cst_31 : f32 to vector<8x128xf32>
    %77 = arith.select %13, %75, %76 : vector<8x128xi1>, vector<8x128xf32>
    %cst_32 = arith.constant -0.353565544 : f32
    %cst_33 = arith.constant -0.111899517 : f32
    %78 = vector.broadcast %cst_32 : f32 to vector<8x128xf32>
    %79 = vector.broadcast %cst_33 : f32 to vector<8x128xf32>
    %80 = arith.select %3, %78, %79 : vector<8x128xi1>, vector<8x128xf32>
    %81 = arith.mulf %80, %77 : vector<8x128xf32>
    %82 = arith.addf %70, %81 : vector<8x128xf32>
    %c113_i32 = arith.constant 113 : i32
    %83 = tpu.dynamic_rotate %14 by %c113_i32 dim 1 : vector<8x128xf32>, i32 -> vector<8x128xf32>
    %c7_i32_34 = arith.constant 7 : i32
    %84 = tpu.dynamic_rotate %83 by %c7_i32_34 dim 0 : vector<8x128xf32>, i32 -> vector<8x128xf32>
    %c113_i32_35 = arith.constant 113 : i32
    %85 = vector.broadcast %c113_i32_35 : i32 to vector<8x128xi32>
    %86 = arith.cmpi slt, %0, %85 : vector<8x128xi32>
    %87 = arith.select %86, %83, %84 : vector<8x128xi1>, vector<8x128xf32>
    %88 = arith.andi %9, %11 : vector<8x128xi1>
    %cst_36 = arith.constant 0.000000e+00 : f32
    %89 = vector.broadcast %cst_36 : f32 to vector<8x128xf32>
    %90 = arith.select %88, %87, %89 : vector<8x128xi1>, vector<8x128xf32>
    %cst_37 = arith.constant -0.344465882 : f32
    %cst_38 = arith.constant 0.132837206 : f32
    %91 = vector.broadcast %cst_37 : f32 to vector<8x128xf32>
    %92 = vector.broadcast %cst_38 : f32 to vector<8x128xf32>
    %93 = arith.select %3, %91, %92 : vector<8x128xi1>, vector<8x128xf32>
    %94 = arith.mulf %93, %90 : vector<8x128xf32>
    %95 = arith.addf %82, %94 : vector<8x128xf32>
    %c112_i32 = arith.constant 112 : i32
    %96 = tpu.dynamic_rotate %14 by %c112_i32 dim 1 : vector<8x128xf32>, i32 -> vector<8x128xf32>
    %c7_i32_39 = arith.constant 7 : i32
    %97 = tpu.dynamic_rotate %96 by %c7_i32_39 dim 0 : vector<8x128xf32>, i32 -> vector<8x128xf32>
    %c112_i32_40 = arith.constant 112 : i32
    %98 = vector.broadcast %c112_i32_40 : i32 to vector<8x128xi32>
    %99 = arith.cmpi slt, %0, %98 : vector<8x128xi32>
    %100 = arith.select %99, %96, %97 : vector<8x128xi1>, vector<8x128xf32>
    %cst_41 = arith.constant 0.000000e+00 : f32
    %101 = vector.broadcast %cst_41 : f32 to vector<8x128xf32>
    %102 = arith.select %9, %100, %101 : vector<8x128xi1>, vector<8x128xf32>
    %cst_42 = arith.constant 0.0891497358 : f32
    %cst_43 = arith.constant -0.357089877 : f32
    %103 = vector.broadcast %cst_42 : f32 to vector<8x128xf32>
    %104 = vector.broadcast %cst_43 : f32 to vector<8x128xf32>
    %105 = arith.select %3, %103, %104 : vector<8x128xi1>, vector<8x128xf32>
    %106 = arith.mulf %105, %102 : vector<8x128xf32>
    %107 = arith.addf %95, %106 : vector<8x128xf32>
    %c111_i32 = arith.constant 111 : i32
    %108 = tpu.dynamic_rotate %14 by %c111_i32 dim 1 : vector<8x128xf32>, i32 -> vector<8x128xf32>
    %c7_i32_44 = arith.constant 7 : i32
    %109 = tpu.dynamic_rotate %108 by %c7_i32_44 dim 0 : vector<8x128xf32>, i32 -> vector<8x128xf32>
    %c111_i32_45 = arith.constant 111 : i32
    %110 = vector.broadcast %c111_i32_45 : i32 to vector<8x128xi32>
    %111 = arith.cmpi slt, %0, %110 : vector<8x128xi32>
    %112 = arith.select %111, %108, %109 : vector<8x128xi1>, vector<8x128xf32>
    %113 = arith.andi %9, %13 : vector<8x128xi1>
    %cst_46 = arith.constant 0.000000e+00 : f32
    %114 = vector.broadcast %cst_46 : f32 to vector<8x128xf32>
    %115 = arith.select %113, %112, %114 : vector<8x128xi1>, vector<8x128xf32>
    %cst_47 = arith.constant -0.39316079 : f32
    %cst_48 = arith.constant -0.0207766909 : f32
    %116 = vector.broadcast %cst_47 : f32 to vector<8x128xf32>
    %117 = vector.broadcast %cst_48 : f32 to vector<8x128xf32>
    %118 = arith.select %3, %116, %117 : vector<8x128xi1>, vector<8x128xf32>
    %119 = arith.mulf %118, %115 : vector<8x128xf32>
    %120 = arith.addf %107, %119 : vector<8x128xf32>
    %cst_49 = arith.constant dense<0.000000e+00> : vector<8xf32>
    %121 = vector.multi_reduction <add>, %120, %cst_49 [1] : vector<8x128xf32> to vector<8xf32>
    %122 = vector.shape_cast %121 : vector<8xf32> to vector<8x1xf32>
    %123 = vector.extract_strided_slice %122 {offsets = [0, 0], sizes = [4, 1], strides = [1, 1]} : vector<8x1xf32> to vector<4x1xf32>
    %124 = vector.shape_cast %123 : vector<4x1xf32> to vector<1x4x1xf32>
    %cst_50 = arith.constant dense<0.000000e+00> : vector<1xf32>
    %125 = vector.multi_reduction <add>, %124, %cst_50 [1, 2] : vector<1x4x1xf32> to vector<1xf32>
    %126 = vector.shape_cast %125 : vector<1xf32> to vector<1x1x1xf32>
    %127 = vector.extract %126[0, 0, 0] : f32 from vector<1x1x1xf32>
    %128 = vector.broadcast %127 : f32 to vector<1x1xf32>
    %cst_51 = arith.constant 0.001953125 : f32
    %129 = vector.broadcast %cst_51 : f32 to vector<1x1xf32>
    %130 = arith.mulf %128, %129 : vector<1x1xf32>
    %131 = vector.extract_strided_slice %122 {offsets = [4, 0], sizes = [4, 1], strides = [1, 1]} : vector<8x1xf32> to vector<4x1xf32>
    %132 = vector.shape_cast %131 : vector<4x1xf32> to vector<1x4x1xf32>
    %cst_52 = arith.constant dense<0.000000e+00> : vector<1xf32>
    %133 = vector.multi_reduction <add>, %132, %cst_52 [1, 2] : vector<1x4x1xf32> to vector<1xf32>
    %134 = vector.shape_cast %133 : vector<1xf32> to vector<1x1x1xf32>
    %135 = vector.extract %134[0, 0, 0] : f32 from vector<1x1x1xf32>
    %136 = vector.broadcast %135 : f32 to vector<1x1xf32>
    %cst_53 = arith.constant 0.001953125 : f32
    %137 = vector.broadcast %cst_53 : f32 to vector<1x1xf32>
    %138 = arith.mulf %136, %137 : vector<1x1xf32>
    %139 = vector.shape_cast %130 : vector<1x1xf32> to vector<1x1xf32>
    %140 = vector.broadcast %139 : vector<1x1xf32> to vector<8x128xf32>
    %141 = vector.shape_cast %138 : vector<1x1xf32> to vector<1x1xf32>
    %142 = vector.broadcast %141 : vector<1x1xf32> to vector<8x128xf32>
    %143 = arith.select %3, %140, %142 : vector<8x128xi1>, vector<8x128xf32>
    %144 = arith.subf %120, %143 : vector<8x128xf32>
    %145 = arith.mulf %144, %144 : vector<8x128xf32>
    %cst_54 = arith.constant dense<0.000000e+00> : vector<8xf32>
    %146 = vector.multi_reduction <add>, %145, %cst_54 [1] : vector<8x128xf32> to vector<8xf32>
    %147 = vector.shape_cast %146 : vector<8xf32> to vector<8x1xf32>
    %148 = vector.extract_strided_slice %147 {offsets = [0, 0], sizes = [4, 1], strides = [1, 1]} : vector<8x1xf32> to vector<4x1xf32>
    %149 = vector.shape_cast %148 : vector<4x1xf32> to vector<1x4x1xf32>
    %cst_55 = arith.constant dense<0.000000e+00> : vector<1xf32>
    %150 = vector.multi_reduction <add>, %149, %cst_55 [1, 2] : vector<1x4x1xf32> to vector<1xf32>
    %151 = vector.shape_cast %150 : vector<1xf32> to vector<1x1x1xf32>
    %152 = vector.extract %151[0, 0, 0] : f32 from vector<1x1x1xf32>
    %153 = vector.broadcast %152 : f32 to vector<1x1xf32>
    %cst_56 = arith.constant 0.001953125 : f32
    %154 = vector.broadcast %cst_56 : f32 to vector<1x1xf32>
    %155 = arith.mulf %153, %154 : vector<1x1xf32>
    %156 = vector.extract_strided_slice %147 {offsets = [4, 0], sizes = [4, 1], strides = [1, 1]} : vector<8x1xf32> to vector<4x1xf32>
    %157 = vector.shape_cast %156 : vector<4x1xf32> to vector<1x4x1xf32>
    %cst_57 = arith.constant dense<0.000000e+00> : vector<1xf32>
    %158 = vector.multi_reduction <add>, %157, %cst_57 [1, 2] : vector<1x4x1xf32> to vector<1xf32>
    %159 = vector.shape_cast %158 : vector<1xf32> to vector<1x1x1xf32>
    %160 = vector.extract %159[0, 0, 0] : f32 from vector<1x1x1xf32>
    %161 = vector.broadcast %160 : f32 to vector<1x1xf32>
    %cst_58 = arith.constant 0.001953125 : f32
    %162 = vector.broadcast %cst_58 : f32 to vector<1x1xf32>
    %163 = arith.mulf %161, %162 : vector<1x1xf32>
    %cst_59 = arith.constant 9.99999974E-6 : f32
    %164 = vector.broadcast %cst_59 : f32 to vector<1x1xf32>
    %165 = arith.addf %155, %164 : vector<1x1xf32>
    %166 = math.rsqrt %165 : vector<1x1xf32>
    %cst_60 = arith.constant 1.000000e+00 : f32
    %167 = vector.broadcast %cst_60 : f32 to vector<1x1xf32>
    %168 = arith.mulf %166, %167 : vector<1x1xf32>
    %cst_61 = arith.constant 9.99999974E-6 : f32
    %169 = vector.broadcast %cst_61 : f32 to vector<1x1xf32>
    %170 = arith.addf %163, %169 : vector<1x1xf32>
    %171 = math.rsqrt %170 : vector<1x1xf32>
    %cst_62 = arith.constant 1.000000e+00 : f32
    %172 = vector.broadcast %cst_62 : f32 to vector<1x1xf32>
    %173 = arith.mulf %171, %172 : vector<1x1xf32>
    %174 = vector.shape_cast %168 : vector<1x1xf32> to vector<1x1xf32>
    %175 = vector.broadcast %174 : vector<1x1xf32> to vector<8x128xf32>
    %176 = vector.shape_cast %173 : vector<1x1xf32> to vector<1x1xf32>
    %177 = vector.broadcast %176 : vector<1x1xf32> to vector<8x128xf32>
    %178 = arith.select %3, %175, %177 : vector<8x128xi1>, vector<8x128xf32>
    %179 = arith.mulf %144, %178 : vector<8x128xf32>
    %cst_63 = arith.constant 0.000000e+00 : f32
    %cst_64 = arith.constant 0.000000e+00 : f32
    %180 = vector.broadcast %cst_63 : f32 to vector<8x128xf32>
    %181 = vector.broadcast %cst_64 : f32 to vector<8x128xf32>
    %182 = arith.select %3, %180, %181 : vector<8x128xi1>, vector<8x128xf32>
    %183 = arith.addf %179, %182 : vector<8x128xf32>
    %cst_65 = arith.constant 0.000000e+00 : f32
    %184 = vector.broadcast %cst_65 : f32 to vector<8x128xf32>
    %185 = arith.maximumf %183, %184 : vector<8x128xf32>
    %cst_66 = arith.constant 0.000000e+00 : f32
    %186 = vector.broadcast %cst_66 : f32 to vector<8x128xf32>
    %cst_67 = arith.constant 0.000000e+00 : f32
    %187 = vector.broadcast %cst_67 : f32 to vector<8x128xf32>
    %c17_i32_68 = arith.constant 17 : i32
    %188 = tpu.dynamic_rotate %185 by %c17_i32_68 dim 1 : vector<8x128xf32>, i32 -> vector<8x128xf32>
    %c1_i32_69 = arith.constant 1 : i32
    %189 = tpu.dynamic_rotate %188 by %c1_i32_69 dim 0 : vector<8x128xf32>, i32 -> vector<8x128xf32>
    %c17_i32_70 = arith.constant 17 : i32
    %190 = vector.broadcast %c17_i32_70 : i32 to vector<8x128xi32>
    %191 = arith.cmpi slt, %0, %190 : vector<8x128xi32>
    %192 = arith.select %191, %189, %188 : vector<8x128xi1>, vector<8x128xf32>
    %193 = arith.andi %7, %11 : vector<8x128xi1>
    %cst_71 = arith.constant 0.000000e+00 : f32
    %194 = vector.broadcast %cst_71 : f32 to vector<8x128xf32>
    %195 = arith.select %193, %192, %194 : vector<8x128xi1>, vector<8x128xf32>
    %cst_72 = arith.constant 0.388690799 : f32
    %cst_73 = arith.constant 0.61050111 : f32
    %196 = vector.broadcast %cst_72 : f32 to vector<8x128xf32>
    %197 = vector.broadcast %cst_73 : f32 to vector<8x128xf32>
    %198 = arith.select %3, %196, %197 : vector<8x128xi1>, vector<8x128xf32>
    %199 = arith.mulf %198, %195 : vector<8x128xf32>
    %200 = arith.addf %186, %199 : vector<8x128xf32>
    %cst_74 = arith.constant 0.412789315 : f32
    %cst_75 = arith.constant -0.446803123 : f32
    %201 = vector.broadcast %cst_74 : f32 to vector<8x128xf32>
    %202 = vector.broadcast %cst_75 : f32 to vector<8x128xf32>
    %203 = arith.select %3, %201, %202 : vector<8x128xi1>, vector<8x128xf32>
    %204 = arith.mulf %203, %195 : vector<8x128xf32>
    %205 = arith.addf %187, %204 : vector<8x128xf32>
    %c16_i32_76 = arith.constant 16 : i32
    %206 = tpu.dynamic_rotate %185 by %c16_i32_76 dim 1 : vector<8x128xf32>, i32 -> vector<8x128xf32>
    %c1_i32_77 = arith.constant 1 : i32
    %207 = tpu.dynamic_rotate %206 by %c1_i32_77 dim 0 : vector<8x128xf32>, i32 -> vector<8x128xf32>
    %c16_i32_78 = arith.constant 16 : i32
    %208 = vector.broadcast %c16_i32_78 : i32 to vector<8x128xi32>
    %209 = arith.cmpi slt, %0, %208 : vector<8x128xi32>
    %210 = arith.select %209, %207, %206 : vector<8x128xi1>, vector<8x128xf32>
    %cst_79 = arith.constant 0.000000e+00 : f32
    %211 = vector.broadcast %cst_79 : f32 to vector<8x128xf32>
    %212 = arith.select %7, %210, %211 : vector<8x128xi1>, vector<8x128xf32>
    %cst_80 = arith.constant 0.406503171 : f32
    %cst_81 = arith.constant 0.289845884 : f32
    %213 = vector.broadcast %cst_80 : f32 to vector<8x128xf32>
    %214 = vector.broadcast %cst_81 : f32 to vector<8x128xf32>
    %215 = arith.select %3, %213, %214 : vector<8x128xi1>, vector<8x128xf32>
    %216 = arith.mulf %215, %212 : vector<8x128xf32>
    %217 = arith.addf %200, %216 : vector<8x128xf32>
    %cst_82 = arith.constant 0.0390332118 : f32
    %cst_83 = arith.constant -0.274295926 : f32
    %218 = vector.broadcast %cst_82 : f32 to vector<8x128xf32>
    %219 = vector.broadcast %cst_83 : f32 to vector<8x128xf32>
    %220 = arith.select %3, %218, %219 : vector<8x128xi1>, vector<8x128xf32>
    %221 = arith.mulf %220, %212 : vector<8x128xf32>
    %222 = arith.addf %205, %221 : vector<8x128xf32>
    %c15_i32_84 = arith.constant 15 : i32
    %223 = tpu.dynamic_rotate %185 by %c15_i32_84 dim 1 : vector<8x128xf32>, i32 -> vector<8x128xf32>
    %c1_i32_85 = arith.constant 1 : i32
    %224 = tpu.dynamic_rotate %223 by %c1_i32_85 dim 0 : vector<8x128xf32>, i32 -> vector<8x128xf32>
    %c15_i32_86 = arith.constant 15 : i32
    %225 = vector.broadcast %c15_i32_86 : i32 to vector<8x128xi32>
    %226 = arith.cmpi slt, %0, %225 : vector<8x128xi32>
    %227 = arith.select %226, %224, %223 : vector<8x128xi1>, vector<8x128xf32>
    %228 = arith.andi %7, %13 : vector<8x128xi1>
    %cst_87 = arith.constant 0.000000e+00 : f32
    %229 = vector.broadcast %cst_87 : f32 to vector<8x128xf32>
    %230 = arith.select %228, %227, %229 : vector<8x128xi1>, vector<8x128xf32>
    %cst_88 = arith.constant -0.122881673 : f32
    %cst_89 = arith.constant -0.516360939 : f32
    %231 = vector.broadcast %cst_88 : f32 to vector<8x128xf32>
    %232 = vector.broadcast %cst_89 : f32 to vector<8x128xf32>
    %233 = arith.select %3, %231, %232 : vector<8x128xi1>, vector<8x128xf32>
    %234 = arith.mulf %233, %230 : vector<8x128xf32>
    %235 = arith.addf %217, %234 : vector<8x128xf32>
    %cst_90 = arith.constant -0.1770138 : f32
    %cst_91 = arith.constant 0.529836178 : f32
    %236 = vector.broadcast %cst_90 : f32 to vector<8x128xf32>
    %237 = vector.broadcast %cst_91 : f32 to vector<8x128xf32>
    %238 = arith.select %3, %236, %237 : vector<8x128xi1>, vector<8x128xf32>
    %239 = arith.mulf %238, %230 : vector<8x128xf32>
    %240 = arith.addf %222, %239 : vector<8x128xf32>
    %c1_i32_92 = arith.constant 1 : i32
    %241 = tpu.dynamic_rotate %185 by %c1_i32_92 dim 1 : vector<8x128xf32>, i32 -> vector<8x128xf32>
    %c1_i32_93 = arith.constant 1 : i32
    %242 = tpu.dynamic_rotate %241 by %c1_i32_93 dim 0 : vector<8x128xf32>, i32 -> vector<8x128xf32>
    %c1_i32_94 = arith.constant 1 : i32
    %243 = vector.broadcast %c1_i32_94 : i32 to vector<8x128xi32>
    %244 = arith.cmpi slt, %0, %243 : vector<8x128xi32>
    %245 = arith.select %244, %242, %241 : vector<8x128xi1>, vector<8x128xf32>
    %cst_95 = arith.constant 0.000000e+00 : f32
    %246 = vector.broadcast %cst_95 : f32 to vector<8x128xf32>
    %247 = arith.select %11, %245, %246 : vector<8x128xi1>, vector<8x128xf32>
    %cst_96 = arith.constant -0.231565639 : f32
    %cst_97 = arith.constant -0.304480612 : f32
    %248 = vector.broadcast %cst_96 : f32 to vector<8x128xf32>
    %249 = vector.broadcast %cst_97 : f32 to vector<8x128xf32>
    %250 = arith.select %3, %248, %249 : vector<8x128xi1>, vector<8x128xf32>
    %251 = arith.mulf %250, %247 : vector<8x128xf32>
    %252 = arith.addf %235, %251 : vector<8x128xf32>
    %cst_98 = arith.constant -0.138388664 : f32
    %cst_99 = arith.constant -0.287899077 : f32
    %253 = vector.broadcast %cst_98 : f32 to vector<8x128xf32>
    %254 = vector.broadcast %cst_99 : f32 to vector<8x128xf32>
    %255 = arith.select %3, %253, %254 : vector<8x128xi1>, vector<8x128xf32>
    %256 = arith.mulf %255, %247 : vector<8x128xf32>
    %257 = arith.addf %240, %256 : vector<8x128xf32>
    %cst_100 = arith.constant 0.114282519 : f32
    %cst_101 = arith.constant -0.0963923707 : f32
    %258 = vector.broadcast %cst_100 : f32 to vector<8x128xf32>
    %259 = vector.broadcast %cst_101 : f32 to vector<8x128xf32>
    %260 = arith.select %3, %258, %259 : vector<8x128xi1>, vector<8x128xf32>
    %261 = arith.mulf %260, %185 : vector<8x128xf32>
    %262 = arith.addf %252, %261 : vector<8x128xf32>
    %cst_102 = arith.constant -0.170129985 : f32
    %cst_103 = arith.constant -0.129395992 : f32
    %263 = vector.broadcast %cst_102 : f32 to vector<8x128xf32>
    %264 = vector.broadcast %cst_103 : f32 to vector<8x128xf32>
    %265 = arith.select %3, %263, %264 : vector<8x128xi1>, vector<8x128xf32>
    %266 = arith.mulf %265, %185 : vector<8x128xf32>
    %267 = arith.addf %257, %266 : vector<8x128xf32>
    %c127_i32_104 = arith.constant 127 : i32
    %268 = tpu.dynamic_rotate %185 by %c127_i32_104 dim 1 : vector<8x128xf32>, i32 -> vector<8x128xf32>
    %c7_i32_105 = arith.constant 7 : i32
    %269 = tpu.dynamic_rotate %268 by %c7_i32_105 dim 0 : vector<8x128xf32>, i32 -> vector<8x128xf32>
    %c127_i32_106 = arith.constant 127 : i32
    %270 = vector.broadcast %c127_i32_106 : i32 to vector<8x128xi32>
    %271 = arith.cmpi slt, %0, %270 : vector<8x128xi32>
    %272 = arith.select %271, %268, %269 : vector<8x128xi1>, vector<8x128xf32>
    %cst_107 = arith.constant 0.000000e+00 : f32
    %273 = vector.broadcast %cst_107 : f32 to vector<8x128xf32>
    %274 = arith.select %13, %272, %273 : vector<8x128xi1>, vector<8x128xf32>
    %cst_108 = arith.constant 0.00566675747 : f32
    %cst_109 = arith.constant -0.278588325 : f32
    %275 = vector.broadcast %cst_108 : f32 to vector<8x128xf32>
    %276 = vector.broadcast %cst_109 : f32 to vector<8x128xf32>
    %277 = arith.select %3, %275, %276 : vector<8x128xi1>, vector<8x128xf32>
    %278 = arith.mulf %277, %274 : vector<8x128xf32>
    %279 = arith.addf %262, %278 : vector<8x128xf32>
    %cst_110 = arith.constant 0.0828515812 : f32
    %cst_111 = arith.constant 0.244571701 : f32
    %280 = vector.broadcast %cst_110 : f32 to vector<8x128xf32>
    %281 = vector.broadcast %cst_111 : f32 to vector<8x128xf32>
    %282 = arith.select %3, %280, %281 : vector<8x128xi1>, vector<8x128xf32>
    %283 = arith.mulf %282, %274 : vector<8x128xf32>
    %284 = arith.addf %267, %283 : vector<8x128xf32>
    %c113_i32_112 = arith.constant 113 : i32
    %285 = tpu.dynamic_rotate %185 by %c113_i32_112 dim 1 : vector<8x128xf32>, i32 -> vector<8x128xf32>
    %c7_i32_113 = arith.constant 7 : i32
    %286 = tpu.dynamic_rotate %285 by %c7_i32_113 dim 0 : vector<8x128xf32>, i32 -> vector<8x128xf32>
    %c113_i32_114 = arith.constant 113 : i32
    %287 = vector.broadcast %c113_i32_114 : i32 to vector<8x128xi32>
    %288 = arith.cmpi slt, %0, %287 : vector<8x128xi32>
    %289 = arith.select %288, %285, %286 : vector<8x128xi1>, vector<8x128xf32>
    %290 = arith.andi %9, %11 : vector<8x128xi1>
    %cst_115 = arith.constant 0.000000e+00 : f32
    %291 = vector.broadcast %cst_115 : f32 to vector<8x128xf32>
    %292 = arith.select %290, %289, %291 : vector<8x128xi1>, vector<8x128xf32>
    %cst_116 = arith.constant 0.172366962 : f32
    %cst_117 = arith.constant -0.180177525 : f32
    %293 = vector.broadcast %cst_116 : f32 to vector<8x128xf32>
    %294 = vector.broadcast %cst_117 : f32 to vector<8x128xf32>
    %295 = arith.select %3, %293, %294 : vector<8x128xi1>, vector<8x128xf32>
    %296 = arith.mulf %295, %292 : vector<8x128xf32>
    %297 = arith.addf %279, %296 : vector<8x128xf32>
    %cst_118 = arith.constant -0.0496068671 : f32
    %cst_119 = arith.constant 0.359902173 : f32
    %298 = vector.broadcast %cst_118 : f32 to vector<8x128xf32>
    %299 = vector.broadcast %cst_119 : f32 to vector<8x128xf32>
    %300 = arith.select %3, %298, %299 : vector<8x128xi1>, vector<8x128xf32>
    %301 = arith.mulf %300, %292 : vector<8x128xf32>
    %302 = arith.addf %284, %301 : vector<8x128xf32>
    %c112_i32_120 = arith.constant 112 : i32
    %303 = tpu.dynamic_rotate %185 by %c112_i32_120 dim 1 : vector<8x128xf32>, i32 -> vector<8x128xf32>
    %c7_i32_121 = arith.constant 7 : i32
    %304 = tpu.dynamic_rotate %303 by %c7_i32_121 dim 0 : vector<8x128xf32>, i32 -> vector<8x128xf32>
    %c112_i32_122 = arith.constant 112 : i32
    %305 = vector.broadcast %c112_i32_122 : i32 to vector<8x128xi32>
    %306 = arith.cmpi slt, %0, %305 : vector<8x128xi32>
    %307 = arith.select %306, %303, %304 : vector<8x128xi1>, vector<8x128xf32>
    %cst_123 = arith.constant 0.000000e+00 : f32
    %308 = vector.broadcast %cst_123 : f32 to vector<8x128xf32>
    %309 = arith.select %9, %307, %308 : vector<8x128xi1>, vector<8x128xf32>
    %cst_124 = arith.constant -0.225983679 : f32
    %cst_125 = arith.constant 0.516676486 : f32
    %310 = vector.broadcast %cst_124 : f32 to vector<8x128xf32>
    %311 = vector.broadcast %cst_125 : f32 to vector<8x128xf32>
    %312 = arith.select %3, %310, %311 : vector<8x128xi1>, vector<8x128xf32>
    %313 = arith.mulf %312, %309 : vector<8x128xf32>
    %314 = arith.addf %297, %313 : vector<8x128xf32>
    %cst_126 = arith.constant 0.499679536 : f32
    %cst_127 = arith.constant -0.0323292688 : f32
    %315 = vector.broadcast %cst_126 : f32 to vector<8x128xf32>
    %316 = vector.broadcast %cst_127 : f32 to vector<8x128xf32>
    %317 = arith.select %3, %315, %316 : vector<8x128xi1>, vector<8x128xf32>
    %318 = arith.mulf %317, %309 : vector<8x128xf32>
    %319 = arith.addf %302, %318 : vector<8x128xf32>
    %c111_i32_128 = arith.constant 111 : i32
    %320 = tpu.dynamic_rotate %185 by %c111_i32_128 dim 1 : vector<8x128xf32>, i32 -> vector<8x128xf32>
    %c7_i32_129 = arith.constant 7 : i32
    %321 = tpu.dynamic_rotate %320 by %c7_i32_129 dim 0 : vector<8x128xf32>, i32 -> vector<8x128xf32>
    %c111_i32_130 = arith.constant 111 : i32
    %322 = vector.broadcast %c111_i32_130 : i32 to vector<8x128xi32>
    %323 = arith.cmpi slt, %0, %322 : vector<8x128xi32>
    %324 = arith.select %323, %320, %321 : vector<8x128xi1>, vector<8x128xf32>
    %325 = arith.andi %9, %13 : vector<8x128xi1>
    %cst_131 = arith.constant 0.000000e+00 : f32
    %326 = vector.broadcast %cst_131 : f32 to vector<8x128xf32>
    %327 = arith.select %325, %324, %326 : vector<8x128xi1>, vector<8x128xf32>
    %cst_132 = arith.constant 0.0690498725 : f32
    %cst_133 = arith.constant 0.298545629 : f32
    %328 = vector.broadcast %cst_132 : f32 to vector<8x128xf32>
    %329 = vector.broadcast %cst_133 : f32 to vector<8x128xf32>
    %330 = arith.select %3, %328, %329 : vector<8x128xi1>, vector<8x128xf32>
    %331 = arith.mulf %330, %327 : vector<8x128xf32>
    %332 = arith.addf %314, %331 : vector<8x128xf32>
    %cst_134 = arith.constant -0.213993922 : f32
    %cst_135 = arith.constant -0.270802945 : f32
    %333 = vector.broadcast %cst_134 : f32 to vector<8x128xf32>
    %334 = vector.broadcast %cst_135 : f32 to vector<8x128xf32>
    %335 = arith.select %3, %333, %334 : vector<8x128xi1>, vector<8x128xf32>
    %336 = arith.mulf %335, %327 : vector<8x128xf32>
    %337 = arith.addf %319, %336 : vector<8x128xf32>
    %c4_i32_136 = arith.constant 4 : i32
    %338 = tpu.dynamic_rotate %337 by %c4_i32_136 dim 0 : vector<8x128xf32>, i32 -> vector<8x128xf32>
    %339 = arith.addf %332, %338 : vector<8x128xf32>
    %cst_137 = arith.constant dense<0.000000e+00> : vector<8xf32>
    %340 = vector.multi_reduction <add>, %339, %cst_137 [1] : vector<8x128xf32> to vector<8xf32>
    %341 = vector.shape_cast %340 : vector<8xf32> to vector<8x1xf32>
    %342 = vector.extract_strided_slice %341 {offsets = [0, 0], sizes = [4, 1], strides = [1, 1]} : vector<8x1xf32> to vector<4x1xf32>
    %343 = vector.shape_cast %342 : vector<4x1xf32> to vector<1x4x1xf32>
    %cst_138 = arith.constant dense<0.000000e+00> : vector<1xf32>
    %344 = vector.multi_reduction <add>, %343, %cst_138 [1, 2] : vector<1x4x1xf32> to vector<1xf32>
    %345 = vector.shape_cast %344 : vector<1xf32> to vector<1x1x1xf32>
    %346 = vector.extract %345[0, 0, 0] : f32 from vector<1x1x1xf32>
    %347 = vector.broadcast %346 : f32 to vector<1x1xf32>
    %cst_139 = arith.constant 0.001953125 : f32
    %348 = vector.broadcast %cst_139 : f32 to vector<1x1xf32>
    %349 = arith.mulf %347, %348 : vector<1x1xf32>
    %350 = vector.extract_strided_slice %341 {offsets = [4, 0], sizes = [4, 1], strides = [1, 1]} : vector<8x1xf32> to vector<4x1xf32>
    %351 = vector.shape_cast %350 : vector<4x1xf32> to vector<1x4x1xf32>
    %cst_140 = arith.constant dense<0.000000e+00> : vector<1xf32>
    %352 = vector.multi_reduction <add>, %351, %cst_140 [1, 2] : vector<1x4x1xf32> to vector<1xf32>
    %353 = vector.shape_cast %352 : vector<1xf32> to vector<1x1x1xf32>
    %354 = vector.extract %353[0, 0, 0] : f32 from vector<1x1x1xf32>
    %355 = vector.broadcast %354 : f32 to vector<1x1xf32>
    %cst_141 = arith.constant 0.001953125 : f32
    %356 = vector.broadcast %cst_141 : f32 to vector<1x1xf32>
    %357 = arith.mulf %355, %356 : vector<1x1xf32>
    %358 = vector.shape_cast %349 : vector<1x1xf32> to vector<1x1xf32>
    %359 = vector.broadcast %358 : vector<1x1xf32> to vector<8x128xf32>
    %360 = vector.shape_cast %357 : vector<1x1xf32> to vector<1x1xf32>
    %361 = vector.broadcast %360 : vector<1x1xf32> to vector<8x128xf32>
    %362 = arith.select %3, %359, %361 : vector<8x128xi1>, vector<8x128xf32>
    %363 = arith.subf %339, %362 : vector<8x128xf32>
    %364 = arith.mulf %363, %363 : vector<8x128xf32>
    %cst_142 = arith.constant dense<0.000000e+00> : vector<8xf32>
    %365 = vector.multi_reduction <add>, %364, %cst_142 [1] : vector<8x128xf32> to vector<8xf32>
    %366 = vector.shape_cast %365 : vector<8xf32> to vector<8x1xf32>
    %367 = vector.extract_strided_slice %366 {offsets = [0, 0], sizes = [4, 1], strides = [1, 1]} : vector<8x1xf32> to vector<4x1xf32>
    %368 = vector.shape_cast %367 : vector<4x1xf32> to vector<1x4x1xf32>
    %cst_143 = arith.constant dense<0.000000e+00> : vector<1xf32>
    %369 = vector.multi_reduction <add>, %368, %cst_143 [1, 2] : vector<1x4x1xf32> to vector<1xf32>
    %370 = vector.shape_cast %369 : vector<1xf32> to vector<1x1x1xf32>
    %371 = vector.extract %370[0, 0, 0] : f32 from vector<1x1x1xf32>
    %372 = vector.broadcast %371 : f32 to vector<1x1xf32>
    %cst_144 = arith.constant 0.001953125 : f32
    %373 = vector.broadcast %cst_144 : f32 to vector<1x1xf32>
    %374 = arith.mulf %372, %373 : vector<1x1xf32>
    %375 = vector.extract_strided_slice %366 {offsets = [4, 0], sizes = [4, 1], strides = [1, 1]} : vector<8x1xf32> to vector<4x1xf32>
    %376 = vector.shape_cast %375 : vector<4x1xf32> to vector<1x4x1xf32>
    %cst_145 = arith.constant dense<0.000000e+00> : vector<1xf32>
    %377 = vector.multi_reduction <add>, %376, %cst_145 [1, 2] : vector<1x4x1xf32> to vector<1xf32>
    %378 = vector.shape_cast %377 : vector<1xf32> to vector<1x1x1xf32>
    %379 = vector.extract %378[0, 0, 0] : f32 from vector<1x1x1xf32>
    %380 = vector.broadcast %379 : f32 to vector<1x1xf32>
    %cst_146 = arith.constant 0.001953125 : f32
    %381 = vector.broadcast %cst_146 : f32 to vector<1x1xf32>
    %382 = arith.mulf %380, %381 : vector<1x1xf32>
    %cst_147 = arith.constant 9.99999974E-6 : f32
    %383 = vector.broadcast %cst_147 : f32 to vector<1x1xf32>
    %384 = arith.addf %374, %383 : vector<1x1xf32>
    %385 = math.rsqrt %384 : vector<1x1xf32>
    %cst_148 = arith.constant 1.000000e+00 : f32
    %386 = vector.broadcast %cst_148 : f32 to vector<1x1xf32>
    %387 = arith.mulf %385, %386 : vector<1x1xf32>
    %cst_149 = arith.constant 9.99999974E-6 : f32
    %388 = vector.broadcast %cst_149 : f32 to vector<1x1xf32>
    %389 = arith.addf %382, %388 : vector<1x1xf32>
    %390 = math.rsqrt %389 : vector<1x1xf32>
    %cst_150 = arith.constant 1.000000e+00 : f32
    %391 = vector.broadcast %cst_150 : f32 to vector<1x1xf32>
    %392 = arith.mulf %390, %391 : vector<1x1xf32>
    %393 = vector.shape_cast %387 : vector<1x1xf32> to vector<1x1xf32>
    %394 = vector.broadcast %393 : vector<1x1xf32> to vector<8x128xf32>
    %395 = vector.shape_cast %392 : vector<1x1xf32> to vector<1x1xf32>
    %396 = vector.broadcast %395 : vector<1x1xf32> to vector<8x128xf32>
    %397 = arith.select %3, %394, %396 : vector<8x128xi1>, vector<8x128xf32>
    %398 = arith.mulf %363, %397 : vector<8x128xf32>
    %cst_151 = arith.constant 0.000000e+00 : f32
    %cst_152 = arith.constant 0.000000e+00 : f32
    %399 = vector.broadcast %cst_151 : f32 to vector<8x128xf32>
    %400 = vector.broadcast %cst_152 : f32 to vector<8x128xf32>
    %401 = arith.select %3, %399, %400 : vector<8x128xi1>, vector<8x128xf32>
    %402 = arith.addf %398, %401 : vector<8x128xf32>
    %cst_153 = arith.constant 0.000000e+00 : f32
    %403 = vector.broadcast %cst_153 : f32 to vector<8x128xf32>
    %404 = arith.maximumf %402, %403 : vector<8x128xf32>
    %405 = vector.extract_strided_slice %404 {offsets = [0, 0], sizes = [2, 128], strides = [1, 1]} : vector<8x128xf32> to vector<2x128xf32>
    %c0_154 = arith.constant 0 : index
    %c0_155 = arith.constant 0 : index
    %406 = vector.load %arg3[%c0_154, %c0_155] : memref<8x128xf32, #tpu.memory_space<vmem>>, vector<2x128xf32>
    tpu.vector_store %arg3[%c0_154, %c0_155], %405 {strides = array<i32>} : memref<8x128xf32, #tpu.memory_space<vmem>>, vector<2x128xf32>,
    %407 = vector.extract_strided_slice %404 {offsets = [4, 0], sizes = [2, 128], strides = [1, 1]} : vector<8x128xf32> to vector<2x128xf32>
    %c2 = arith.constant 2 : index
    %c0_156 = arith.constant 0 : index
    %408 = vector.load %arg3[%c2, %c0_156] : memref<8x128xf32, #tpu.memory_space<vmem>>, vector<2x128xf32>
    tpu.vector_store %arg3[%c2, %c0_156], %407 {strides = array<i32>} : memref<8x128xf32, #tpu.memory_space<vmem>>, vector<2x128xf32>,
    %409 = vector.extract_strided_slice %404 {offsets = [2, 0], sizes = [2, 128], strides = [1, 1]} : vector<8x128xf32> to vector<2x128xf32>
    %c4 = arith.constant 4 : index
    %c0_157 = arith.constant 0 : index
    %410 = vector.load %arg3[%c4, %c0_157] : memref<8x128xf32, #tpu.memory_space<vmem>>, vector<2x128xf32>
    tpu.vector_store %arg3[%c4, %c0_157], %409 {strides = array<i32>} : memref<8x128xf32, #tpu.memory_space<vmem>>, vector<2x128xf32>,
    %411 = vector.extract_strided_slice %404 {offsets = [6, 0], sizes = [2, 128], strides = [1, 1]} : vector<8x128xf32> to vector<2x128xf32>
    %c6 = arith.constant 6 : index
    %c0_158 = arith.constant 0 : index
    %412 = vector.load %arg3[%c6, %c0_158] : memref<8x128xf32, #tpu.memory_space<vmem>>, vector<2x128xf32>
    tpu.vector_store %arg3[%c6, %c0_158], %411 {strides = array<i32>} : memref<8x128xf32, #tpu.memory_space<vmem>>, vector<2x128xf32>,
    return
  }
}

</mosaic_0001>

<llo_original>
// kernel: _lambda_.1
$region0: #{_lambda_.1}
  #allocation0 [shape = 'u32[]', space=smem, size = 0x4, offset = 0x4, fixed_abs, tag = 'smem constant byte address 0x4 - core index']
  #allocation1 [shape = 'u32[144,128]{1,0:T(1,128)}', space=vmem, size = 0x12000, scoped, tag = 'internal scratch']
  %s0 = inlined_call_operand.vmem [shape: f32[8,128], index: 0, kind: input, shape index: {}]
  %s1 = inlined_call_operand.vmem [shape: s32[8,128], index: 1, kind: input, shape index: {}]
  %s2 = inlined_call_operand.vmem [shape: s32[8,128], index: 2, kind: input, shape index: {}]
  %s3 = inlined_call_operand.vmem [shape: f32[8,128], index: 3, kind: output, shape index: {}]
  %s4 = sld [smem:[#allocation0]]
  $region22: #{_lambda_.1} parent=0
    _
  %s6 = ssub.s32 1, %s4
  %s7 = scalar_select 0, %s6, %s4
  // Predicated region
  $region2: #{_lambda_.1} parent=0 // pred_check
    _
  $region3: #{_lambda_.1} parent=0 // pred_check_branch
    %9 = sbr.rel (0) target = $region5
  $region4: #{_lambda_.1} parent=0 // pred_region
    _
  $region5: #{_lambda_.1} parent=0 // pred_fallthru
    _
  // Predicated region
  $region6: #{_lambda_.1} parent=0 // pred_check
    _
  $region7: #{_lambda_.1} parent=0 // pred_check_branch
    %11 = sbr.rel (0) target = $region9
  $region8: #{_lambda_.1} parent=0 // pred_region
    _
  $region9: #{_lambda_.1} parent=0 // pred_fallthru
    _
  // Predicated region
  $region10: #{_lambda_.1} parent=0 // pred_check
    _
  $region11: #{_lambda_.1} parent=0 // pred_check_branch
    %13 = sbr.rel (0) target = $region13
  $region12: #{_lambda_.1} parent=0 // pred_region
    _
  $region13: #{_lambda_.1} parent=0 // pred_fallthru
    _
  %v14 = vlaneseq
  %v15 = vand.u32 %v14, 127
  %v16 = vlaneseq
  %v17 = vshrl.u32 %v16, 7
  %vm18 = vcmp.lt.s32.totalorder %v17, 4
  %v19 = vld [vmem:[%s1] sm:$0xff]
  %v20 = vld [vmem:[%s2] sm:$0xff]
  %vm21 = vcmp.ge.s32.totalorder %v19, 1
  %vm22 = vcmp.le.s32.totalorder %v19, 14
  %vm23 = vcmp.ge.s32.totalorder %v20, 1
  %vm24 = vcmp.le.s32.totalorder %v20, 14
  %v25 = vld [vmem:[%s0] sm:$0xff]
  %26 = vrot.lane.b32.xlu0 %v25, 17
  %v27 = vpop.permute.xlu0 %26
  %v28 = vrot.slane %v27, 7
  %vm29 = vcmp.lt.s32.totalorder %v15, 17
  %v30 = vsel %vm29, %v28, %v27
  %vm31 = vmand %vm21, %vm23
  %v32 = vsel %vm31, %v30, 0.0
  %v33 = vsel %vm18, -0.73273677, 0.6390608
  %v34 = vmul.f32 %v33, %v32
  %v35 = vadd.f32 %v34, 0.0
  %36 = vrot.lane.b32.xlu0 %v25, 16
  %v37 = vpop.permute.xlu0 %36
  %v38 = vrot.slane %v37, 7
  %vm39 = vcmp.lt.s32.totalorder %v15, 16
  %v40 = vsel %vm39, %v38, %v37
  %v41 = vsel %vm21, %v40, 0.0
  %v42 = vsel %vm18, -0.6107042, -0.05687171
  %v43 = vmul.f32 %v42, %v41
  %v44 = vadd.f32 %v35, %v43
  %45 = vrot.lane.b32.xlu0 %v25, 15
  %v46 = vpop.permute.xlu0 %45
  %v47 = vrot.slane %v46, 7
  %vm48 = vcmp.lt.s32.totalorder %v15, 15
  %v49 = vsel %vm48, %v47, %v46
  %vm50 = vmand %vm21, %vm24
  %v51 = vsel %vm50, %v49, 0.0
  %v52 = vsel %vm18, 0.061663274, 0.28920364
  %v53 = vmul.f32 %v52, %v51
  %v54 = vadd.f32 %v44, %v53
  %55 = vrot.lane.b32.xlu0 %v25, 1
  %v56 = vpop.permute.xlu0 %55
  %v57 = vrot.slane %v56, 7
  %vm58 = vcmp.lt.s32.totalorder %v15, 1
  %v59 = vsel %vm58, %v57, %v56
  %v60 = vsel %vm23, %v59, 0.0
  %v61 = vsel %vm18, -0.106065065, -0.39033005
  %v62 = vmul.f32 %v61, %v60
  %v63 = vadd.f32 %v54, %v62
  %v64 = vsel %vm18, -0.22859222, -0.22460815
  %v65 = vmul.f32 %v64, %v25
  %v66 = vadd.f32 %v63, %v65
  %67 = vrot.lane.b32.xlu0 %v25, 127
  %v68 = vpop.permute.xlu0 %67
  %v69 = vrot.slane %v68, 1
  %vm70 = vcmp.lt.s32.totalorder %v15, 127
  %v71 = vsel %vm70, %v68, %v69
  %v72 = vsel %vm24, %v71, 0.0
  %v73 = vsel %vm18, -0.35356554, -0.11189952
  %v74 = vmul.f32 %v73, %v72
  %v75 = vadd.f32 %v66, %v74
  %76 = vrot.lane.b32.xlu0 %v25, 113
  %v77 = vpop.permute.xlu0 %76
  %v78 = vrot.slane %v77, 1
  %vm79 = vcmp.lt.s32.totalorder %v15, 113
  %v80 = vsel %vm79, %v77, %v78
  %vm81 = vmand %vm22, %vm23
  %v82 = vsel %vm81, %v80, 0.0
  %v83 = vsel %vm18, -0.34446588, 0.1328372
  %v84 = vmul.f32 %v83, %v82
  %v85 = vadd.f32 %v75, %v84
  %86 = vrot.lane.b32.xlu0 %v25, 112
  %v87 = vpop.permute.xlu0 %86
  %v88 = vrot.slane %v87, 1
  %vm89 = vcmp.lt.s32.totalorder %v15, 112
  %v90 = vsel %vm89, %v87, %v88
  %v91 = vsel %vm22, %v90, 0.0
  %v92 = vsel %vm18, 0.089149736, -0.35708988
  %v93 = vmul.f32 %v92, %v91
  %v94 = vadd.f32 %v85, %v93
  %95 = vrot.lane.b32.xlu0 %v25, 111
  %v96 = vpop.permute.xlu0 %95
  %v97 = vrot.slane %v96, 1
  %vm98 = vcmp.lt.s32.totalorder %v15, 111
  %v99 = vsel %vm98, %v96, %v97
  %vm100 = vmand %vm22, %vm24
  %v101 = vsel %vm100, %v99, 0.0
  %v102 = vsel %vm18, -0.3931608, -0.02077669
  %v103 = vmul.f32 %v102, %v101
  %v104 = vadd.f32 %v94, %v103
  %105 = vadd.xlane.f32.xlu0 %v104
  %v106 = vpop.xlane.xlu0 %105
  %vm107 = vcmask 3072
  %v108 = vsel %vm107, %v106, 0.0
  %109 = vadd.xlane.f32.xlu0 %v108
  %v110 = vpop.xlane.xlu0 %109
  %v111 = vrot.slane %v110, 4
  %v112 = vadd.f32 %v110, %v111
  %v113 = vrot.slane %v112, 2
  %v114 = vadd.f32 %v112, %v113
  %v115 = vrot.slane %v114, 1
  %v116 = vadd.f32 %v114, %v115
  %s117 = vtos %v116
  %v118 = vstv %s117
  %v119 = vmul.f32 %v118, 0.001953125
  %v121 = vrot.slane %v106, 4
  %v123 = vsel %vm107, %v121, 0.0
  %124 = vadd.xlane.f32.xlu0 %v123
  %v125 = vpop.xlane.xlu0 %124
  %v126 = vrot.slane %v125, 4
  %v127 = vadd.f32 %v125, %v126
  %v128 = vrot.slane %v127, 2
  %v129 = vadd.f32 %v127, %v128
  %v130 = vrot.slane %v129, 1
  %v131 = vadd.f32 %v129, %v130
  %s132 = vtos %v131
  %v133 = vstv %s132
  %v134 = vmul.f32 %v133, 0.001953125
  %v135 = vsel %vm18, %v119, %v134
  %v136 = vsub.f32 %v104, %v135
  %v137 = vmul.f32 %v136, %v136
  %138 = vadd.xlane.f32.xlu0 %v137
  %v139 = vpop.xlane.xlu0 %138
  %v140 = vsel %vm107, %v139, 0.0
  %141 = vadd.xlane.f32.xlu0 %v140
  %v142 = vpop.xlane.xlu0 %141
  %v143 = vrot.slane %v142, 4
  %v144 = vadd.f32 %v142, %v143
  %v145 = vrot.slane %v144, 2
  %v146 = vadd.f32 %v144, %v145
  %v147 = vrot.slane %v146, 1
  %v148 = vadd.f32 %v146, %v147
  %s149 = vtos %v148
  %v150 = vstv %s149
  %v151 = vmul.f32 %v150, 0.001953125
  %v153 = vrot.slane %v139, 4
  %v155 = vsel %vm107, %v153, 0.0
  %156 = vadd.xlane.f32.xlu0 %v155
  %v157 = vpop.xlane.xlu0 %156
  %v158 = vrot.slane %v157, 4
  %v159 = vadd.f32 %v157, %v158
  %v160 = vrot.slane %v159, 2
  %v161 = vadd.f32 %v159, %v160
  %v162 = vrot.slane %v161, 1
  %v163 = vadd.f32 %v161, %v162
  %s164 = vtos %v163
  %v165 = vstv %s164
  %v166 = vmul.f32 %v165, 0.001953125
  %v167 = vadd.f32 %v151, 1e-05
  %v168 = vrsqrt.pop %v167
  %v169 = vadd.f32 %v166, 1e-05
  %v170 = vrsqrt.pop %v169
  %v171 = vsel %vm18, %v168, %v170
  %v172 = vmul.f32 %v136, %v171
  %v173 = vadd.f32 %v172, 0.0
  %v174 = vmax.f32 %v173, 0.0
  %175 = vrot.lane.b32.xlu0 %v174, 17
  %v176 = vpop.permute.xlu0 %175
  %v177 = vrot.slane %v176, 7
  %v178 = vsel %vm29, %v177, %v176
  %v179 = vsel %vm31, %v178, 0.0
  %v180 = vsel %vm18, 0.3886908, 0.6105011
  %v181 = vmul.f32 %v180, %v179
  %v182 = vadd.f32 %v181, 0.0
  %v183 = vsel %vm18, 0.41278931, -0.44680312
  %v184 = vmul.f32 %v183, %v179
  %v185 = vadd.f32 %v184, 0.0
  %186 = vrot.lane.b32.xlu0 %v174, 16
  %v187 = vpop.permute.xlu0 %186
  %v188 = vrot.slane %v187, 7
  %v189 = vsel %vm39, %v188, %v187
  %v190 = vsel %vm21, %v189, 0.0
  %v191 = vsel %vm18, 0.40650317, 0.28984588
  %v192 = vmul.f32 %v191, %v190
  %v193 = vadd.f32 %v182, %v192
  %v194 = vsel %vm18, 0.03903321, -0.27429593
  %v195 = vmul.f32 %v194, %v190
  %v196 = vadd.f32 %v185, %v195
  %197 = vrot.lane.b32.xlu0 %v174, 15
  %v198 = vpop.permute.xlu0 %197
  %v199 = vrot.slane %v198, 7
  %v200 = vsel %vm48, %v199, %v198
  %v201 = vsel %vm50, %v200, 0.0
  %v202 = vsel %vm18, -0.12288167, -0.51636094
  %v203 = vmul.f32 %v202, %v201
  %v204 = vadd.f32 %v193, %v203
  %v205 = vsel %vm18, -0.1770138, 0.5298362
  %v206 = vmul.f32 %v205, %v201
  %v207 = vadd.f32 %v196, %v206
  %208 = vrot.lane.b32.xlu0 %v174, 1
  %v209 = vpop.permute.xlu0 %208
  %v210 = vrot.slane %v209, 7
  %v211 = vsel %vm58, %v210, %v209
  %v212 = vsel %vm23, %v211, 0.0
  %v213 = vsel %vm18, -0.23156564, -0.3044806
  %v214 = vmul.f32 %v213, %v212
  %v215 = vadd.f32 %v204, %v214
  %v216 = vsel %vm18, -0.13838866, -0.28789908
  %v217 = vmul.f32 %v216, %v212
  %v218 = vadd.f32 %v207, %v217
  %v219 = vsel %vm18, 0.11428252, -0.09639237
  %v220 = vmul.f32 %v219, %v174
  %v221 = vadd.f32 %v215, %v220
  %v222 = vsel %vm18, -0.17012998, -0.12939599
  %v223 = vmul.f32 %v222, %v174
  %v224 = vadd.f32 %v218, %v223
  %225 = vrot.lane.b32.xlu0 %v174, 127
  %v226 = vpop.permute.xlu0 %225
  %v227 = vrot.slane %v226, 1
  %v228 = vsel %vm70, %v226, %v227
  %v229 = vsel %vm24, %v228, 0.0
  %v230 = vsel %vm18, 0.0056667575, -0.27858832
  %v231 = vmul.f32 %v230, %v229
  %v232 = vadd.f32 %v221, %v231
  %v233 = vsel %vm18, 0.08285158, 0.2445717
  %v234 = vmul.f32 %v233, %v229
  %v235 = vadd.f32 %v224, %v234
  %236 = vrot.lane.b32.xlu0 %v174, 113
  %v237 = vpop.permute.xlu0 %236
  %v238 = vrot.slane %v237, 1
  %v239 = vsel %vm79, %v237, %v238
  %v240 = vsel %vm81, %v239, 0.0
  %v241 = vsel %vm18, 0.17236696, -0.18017752
  %v242 = vmul.f32 %v241, %v240
  %v243 = vadd.f32 %v232, %v242
  %v244 = vsel %vm18, -0.049606867, 0.35990217
  %v245 = vmul.f32 %v244, %v240
  %v246 = vadd.f32 %v235, %v245
  %247 = vrot.lane.b32.xlu0 %v174, 112
  %v248 = vpop.permute.xlu0 %247
  %v249 = vrot.slane %v248, 1
  %v250 = vsel %vm89, %v248, %v249
  %v251 = vsel %vm22, %v250, 0.0
  %v252 = vsel %vm18, -0.22598368, 0.5166765
  %v253 = vmul.f32 %v252, %v251
  %v254 = vadd.f32 %v243, %v253
  %v255 = vsel %vm18, 0.49967954, -0.03232927
  %v256 = vmul.f32 %v255, %v251
  %v257 = vadd.f32 %v246, %v256
  %258 = vrot.lane.b32.xlu0 %v174, 111
  %v259 = vpop.permute.xlu0 %258
  %v260 = vrot.slane %v259, 1
  %v261 = vsel %vm98, %v259, %v260
  %v262 = vsel %vm100, %v261, 0.0
  %v263 = vsel %vm18, 0.06904987, 0.29854563
  %v264 = vmul.f32 %v263, %v262
  %v265 = vadd.f32 %v254, %v264
  %v266 = vsel %vm18, -0.21399392, -0.27080294
  %v267 = vmul.f32 %v266, %v262
  %v268 = vadd.f32 %v257, %v267
  %v269 = vrot.slane %v268, 4
  %v270 = vadd.f32 %v265, %v269
  %271 = vadd.xlane.f32.xlu0 %v270
  %v272 = vpop.xlane.xlu0 %271
  %v273 = vsel %vm107, %v272, 0.0
  %274 = vadd.xlane.f32.xlu0 %v273
  %v275 = vpop.xlane.xlu0 %274
  %v276 = vrot.slane %v275, 4
  %v277 = vadd.f32 %v275, %v276
  %v278 = vrot.slane %v277, 2
  %v279 = vadd.f32 %v277, %v278
  %v280 = vrot.slane %v279, 1
  %v281 = vadd.f32 %v279, %v280
  %s282 = vtos %v281
  %v283 = vstv %s282
  %v284 = vmul.f32 %v283, 0.001953125
  %v286 = vrot.slane %v272, 4
  %v288 = vsel %vm107, %v286, 0.0
  %289 = vadd.xlane.f32.xlu0 %v288
  %v290 = vpop.xlane.xlu0 %289
  %v291 = vrot.slane %v290, 4
  %v292 = vadd.f32 %v290, %v291
  %v293 = vrot.slane %v292, 2
  %v294 = vadd.f32 %v292, %v293
  %v295 = vrot.slane %v294, 1
  %v296 = vadd.f32 %v294, %v295
  %s297 = vtos %v296
  %v298 = vstv %s297
  %v299 = vmul.f32 %v298, 0.001953125
  %v300 = vsel %vm18, %v284, %v299
  %v301 = vsub.f32 %v270, %v300
  %v302 = vmul.f32 %v301, %v301
  %303 = vadd.xlane.f32.xlu0 %v302
  %v304 = vpop.xlane.xlu0 %303
  %v305 = vsel %vm107, %v304, 0.0
  %306 = vadd.xlane.f32.xlu0 %v305
  %v307 = vpop.xlane.xlu0 %306
  %v308 = vrot.slane %v307, 4
  %v309 = vadd.f32 %v307, %v308
  %v310 = vrot.slane %v309, 2
  %v311 = vadd.f32 %v309, %v310
  %v312 = vrot.slane %v311, 1
  %v313 = vadd.f32 %v311, %v312
  %s314 = vtos %v313
  %v315 = vstv %s314
  %v316 = vmul.f32 %v315, 0.001953125
  %v318 = vrot.slane %v304, 4
  %v320 = vsel %vm107, %v318, 0.0
  %321 = vadd.xlane.f32.xlu0 %v320
  %v322 = vpop.xlane.xlu0 %321
  %v323 = vrot.slane %v322, 4
  %v324 = vadd.f32 %v322, %v323
  %v325 = vrot.slane %v324, 2
  %v326 = vadd.f32 %v324, %v325
  %v327 = vrot.slane %v326, 1
  %v328 = vadd.f32 %v326, %v327
  %s329 = vtos %v328
  %v330 = vstv %s329
  %v331 = vmul.f32 %v330, 0.001953125
  %v332 = vadd.f32 %v316, 1e-05
  %v333 = vrsqrt.pop %v332
  %v334 = vadd.f32 %v331, 1e-05
  %v335 = vrsqrt.pop %v334
  %v336 = vsel %vm18, %v333, %v335
  %v337 = vmul.f32 %v301, %v336
  %v338 = vadd.f32 %v337, 0.0
  %v339 = vmax.f32 %v338, 0.0
  %340 = vst [vmem:[%s3] sm:$0x3] %v339
  %341 = vst [vmem:[%s3 - $0x2] sm:$0x30] %v339
  %342 = vst [vmem:[%s3 + $0x2] sm:$0xc] %v339
  %343 = vst [vmem:[%s3] sm:$0xc0] %v339
  // Predicated region
  $region14: #{_lambda_.1} parent=0 // pred_check
    _
  $region15: #{_lambda_.1} parent=0 // pred_check_branch
    %345 = sbr.rel (0) target = $region17
  $region16: #{_lambda_.1} parent=0 // pred_region
    _
  $region17: #{_lambda_.1} parent=0 // pred_fallthru
    _
  // Predicated region
  $region18: #{_lambda_.1} parent=0 // pred_check
    _
  $region19: #{_lambda_.1} parent=0 // pred_check_branch
    %347 = sbr.rel (0) target = $region21
  $region20: #{_lambda_.1} parent=0 // pred_region
    _
  $region21: #{_lambda_.1} parent=0 // pred_fallthru
    _

</llo_original>
